<compile_context>
chip_gen: v6e
topology: v6e:2x2x1
jax: 0.10.0
libtpu: 0.0.40
codegen_flags: <defaults>
</compile_context>

<pallas_src>
import jax
import jax.numpy as jnp
from jax.experimental import pallas as pl
from jax.experimental.pallas import tpu as pltpu


def _identity_kernel(x_ref, o_ref):
    # Pure passthrough on the current VMEM tile.
    o_ref[...] = x_ref[...]


_TARGET_BLOCK_BYTES = 2 * 1024 * 1024  # ~2 MiB per block (safe on v5e/v6e/v7x)


def _copy_2d(x2d):
    """Copy a 2-D array (last dim a multiple of 128) through the Pallas kernel."""
    rows, cols = x2d.shape
    row_bytes = cols * x2d.dtype.itemsize

    if rows * row_bytes <= _TARGET_BLOCK_BYTES or rows <= 8:
        tile_rows = rows                                    # whole array, one block
    else:
        tile_rows = max(8, (_TARGET_BLOCK_BYTES // row_bytes) // 8 * 8)
        tile_rows = min(tile_rows, (rows // 8) * 8)         # keep multiple of 8

    grid = (pl.cdiv(rows, tile_rows),)

    return pl.pallas_call(
        _identity_kernel,
        out_shape=jax.ShapeDtypeStruct((rows, cols), x2d.dtype),
        grid=grid,
        in_specs=[pl.BlockSpec((tile_rows, cols), lambda i: (i, 0))],
        out_specs=pl.BlockSpec((tile_rows, cols), lambda i: (i, 0)),
        input_output_aliases={0: 0},
        compiler_params=pltpu.CompilerParams(
            dimension_semantics=("parallel",)),
    )(x2d)


@jax.jit
def identity(x):
    """Identity forward pass: returns a tensor equal to x (same shape/dtype)."""
    orig_shape = x.shape
    n = x.size
    if n == 0:
        return x

    if n % 128 == 0:
        # Lane-dense, zero-copy reshape: pick the largest multiple-of-128
        # divisor of n (capped at 4096) as the last dim.
        cols = 128
        c = 256
        cap = min(n, 4096)
        while c <= cap:
            if n % c == 0:
                cols = c
            c += 128
        rows = n // cols
        out2d = _copy_2d(x.reshape(rows, cols))
        return out2d.reshape(orig_shape)

    # Rare fallback: numel not a multiple of 128 -> pad once, copy, slice back.
    cols = 128 if n < 512 else 512
    rows = pl.cdiv(n, cols)
    flat = jnp.zeros((rows * cols,), dtype=x.dtype).at[:n].set(x.reshape(-1))
    out2d = _copy_2d(flat.reshape(rows, cols))
    return out2d.reshape(-1)[:n].reshape(orig_shape)


if __name__ == "__main__":
    key = jax.random.PRNGKey(0)
    # Small NCHW input consistent with a vision-transformer style tensor.
    x = jax.random.normal(key, (2, 4, 16, 16), dtype=jnp.float32)

    y = identity(x)
    jax.block_until_ready(y)

    assert y.shape == x.shape, (y.shape, x.shape)
    assert y.dtype == x.dtype, (y.dtype, x.dtype)
    assert bool(jnp.all(y == x)), "identity output mismatch"

    print("KERNEL_OK")
</pallas_src>

<mosaic_0001>
module attributes {stable_mosaic.version = 11 : i64} {
  func.func @_identity_kernel(%arg0: i32, %arg1: memref<1x2048xf32, #tpu.memory_space<vmem>>, %arg2: memref<1x2048xf32, #tpu.memory_space<vmem>>) attributes {dimension_semantics = [#tpu.dimension_semantics<parallel>], iteration_bounds = array<i64: 1>, scalar_prefetch = 0 : i64, scratch_operands = 0 : i64, tpu.core_type = #tpu.core_type<tc>, window_params = [{transform_indices = @transform_0, window_bounds = array<i64: 1, 2048>}, {transform_indices = @transform_1, window_bounds = array<i64: 1, 2048>}]} {
    %c0 = arith.constant 0 : index
    %c0_0 = arith.constant 0 : index
    %0 = vector.load %arg1[%c0, %c0_0] : memref<1x2048xf32, #tpu.memory_space<vmem>>, vector<1x2048xf32>
    %c0_1 = arith.constant 0 : index
    %c0_2 = arith.constant 0 : index
    %1 = vector.load %arg2[%c0_1, %c0_2] : memref<1x2048xf32, #tpu.memory_space<vmem>>, vector<1x2048xf32>
    tpu.vector_store %arg2[%c0_1, %c0_2], %0 {strides = array<i32>} : memref<1x2048xf32, #tpu.memory_space<vmem>>, vector<1x2048xf32>,
    return
  }
  func.func @transform_0(%arg0: i32) -> (i32, i32) {
    %c0_i32 = arith.constant 0 : i32
    %c0_i32_0 = arith.constant 0 : i32
    return %arg0, %c0_i32 : i32, i32
  }
  func.func @transform_1(%arg0: i32) -> (i32, i32) {
    %c0_i32 = arith.constant 0 : i32
    %c0_i32_0 = arith.constant 0 : i32
    return %arg0, %c0_i32 : i32, i32
  }
}

</mosaic_0001>

<llo_original>
// kernel: identity.1
$region0: #{identity.1}
  #allocation0 [shape = 'u32[]', space=smem, size = 0x4, offset = 0x4, fixed_abs, tag = 'smem constant byte address 0x4 - core index']
  #allocation1 [shape = 'u32[144,128]{1,0:T(1,128)}', space=vmem, size = 0x12000, scoped, tag = 'internal scratch']
  %s0 = inlined_call_operand.vmem [shape: f32[1,2048], index: 0, kind: input, shape index: {}, may-alias: {0,1}]
  %s1 = inlined_call_operand.vmem [shape: f32[1,2048], index: 1, kind: output, shape index: {}, may-alias: {0,1}]
  %s2 = sld [smem:[#allocation0]]
  $region14: #{identity.1} parent=0
    _
  %s4 = ssub.s32 1, %s2
  %s5 = scalar_select 0, %s4, %s2
  // Predicated region
  $region2: #{identity.1} parent=0 // pred_check
    _
  $region3: #{identity.1} parent=0 // pred_check_branch
    %7 = sbr.rel (0) target = $region5
  $region4: #{identity.1} parent=0 // pred_region
    _
  $region5: #{identity.1} parent=0 // pred_fallthru
    _
  %v8 = vld [vmem:[%s0] sm:$0xff]
  %v9 = vld [vmem:[%s0 + $0x8] sm:$0xff]
  %10 = vst [vmem:[%s1] sm:$0xff] %v8
  %11 = vst [vmem:[%s1 + $0x8] sm:$0xff] %v9
  // Predicated region
  $region6: #{identity.1} parent=0 // pred_check
    _
  $region7: #{identity.1} parent=0 // pred_check_branch
    %13 = sbr.rel (0) target = $region9
  $region8: #{identity.1} parent=0 // pred_region
    _
  $region9: #{identity.1} parent=0 // pred_fallthru
    _
  // Predicated region
  $region10: #{identity.1} parent=0 // pred_check
    _
  $region11: #{identity.1} parent=0 // pred_check_branch
    %15 = sbr.rel (0) target = $region13
  $region12: #{identity.1} parent=0 // pred_region
    _
  $region13: #{identity.1} parent=0 // pred_fallthru
    _

</llo_original>
